<compile_context>
chip_gen: v7x
topology: tpu7x:2x2x1
jax: 0.10.0
libtpu: 0.0.40
codegen_flags: <defaults>
</compile_context>

<pallas_src>
import functools

import jax
import jax.numpy as jnp
import numpy as np
from jax.experimental import pallas as pl
from jax.experimental.pallas import tpu as pltpu

THRESH = 0.5
MARGIN = 0.1
SCALE_POS = 2.0
SCALE_NEG = 40.0
EPSILON = 1e-5
_BIG = 1e30

_TYPE_IDX = {"ly": 0, "si": 1, "st": 2}


def _round_up(x, m):
    return ((x + m - 1) // m) * m


def _cdiv(a, b):
    return -(-a // b)


def _chip_tuning():
    """Generation-aware row-tile cap and VMEM limit."""
    tq_max = 256
    vmem_limit = 48 * 1024 * 1024            # conservative fallback (fits v7x)
    try:
        kind = jax.devices()[0].device_kind.lower()
        if "v5 lite" in kind or "v5e" in kind or "v5lite" in kind:
            tq_max = 128                     # v5e MXU already saturates at M=128
    except Exception:
        pass
    try:
        cap = pltpu.get_tpu_info().vmem_capacity_bytes
        # ~85% of physical: ~108 MiB on v5e/v6e (128 MiB), ~54 MiB on v7x (64 MiB)
        vmem_limit = min(int(cap * 0.85), cap - 8 * 1024 * 1024)
    except Exception:
        pass
    return tq_max, max(vmem_limit, 32 * 1024 * 1024)


def _ms_loss_kernel(q_ref, kt_ref, sel_row_ref, sel_col_ref, lab_row_ref,
                    lab_col_ref, col_idx_ref, out_ref, pos_scr, neg_scr,
                    *, tq, chunk, nchunks):
    """One grid step: query rows [i*tq,(i+1)*tq) vs. all (padded) key columns.

    Pass 1 (per key chunk): (tq,D)x(D,chunk) MXU matmul, masking, stash
      masked-pos / masked-neg slabs into VMEM scratch, accumulate running
      per-row min(pos) / max(neg).
    Pass 2 (per key chunk): re-read the masked slabs, accumulate the
      margin-gated exp sums.
    """
    i = pl.program_id(0)

    q = q_ref[...]                                          # (tq, D)
    lab_row = lab_row_ref[...]                              # (tq, 1) int32
    row_ids = i * tq + jax.lax.broadcasted_iota(jnp.int32, (tq, 1), 0)

    big = jnp.float32(_BIG)

    # ---------------- pass 1: matmul + masks + running min/max ---------------
    def pass1(c, carry):
        min_pos, max_neg = carry
        c0 = pl.multiple_of(c * chunk, 128)
        kt_c = kt_ref[:, pl.ds(c0, chunk)]                  # (D, chunk)
        sim = jax.lax.dot_general(                          # (tq, chunk), f32 acc
            q, kt_c, dimension_numbers=(((1,), (0,)), ((), ())),
            preferred_element_type=jnp.float32)

        sel_c = sel_col_ref[:, pl.ds(c0, chunk)] != 0       # (1, chunk) bool
        lab_c = lab_col_ref[:, pl.ds(c0, chunk)]            # (1, chunk) int32
        col_ids = col_idx_ref[:, pl.ds(c0, chunk)]          # (1, chunk) int32

        eq_sel = jnp.logical_and(sel_c, lab_row == lab_c)   # selected & same label
        # candidate positives: selected, same label, not self, sim < 1 - eps
        pos_f = jnp.logical_and(
            eq_sel,
            jnp.logical_and(row_ids != col_ids, sim < 1.0 - EPSILON))
        # candidate negatives: selected & different label  (== sel XOR eq_sel)
        neg_f = jnp.logical_xor(sel_c, eq_sel)

        mpos = jnp.where(pos_f, sim, big)
        mneg = jnp.where(neg_f, sim, -big)
        pos_scr[:, pl.ds(c0, chunk)] = mpos
        neg_scr[:, pl.ds(c0, chunk)] = mneg

        min_pos = jnp.minimum(min_pos, jnp.min(mpos, axis=1, keepdims=True))
        max_neg = jnp.maximum(max_neg, jnp.max(mneg, axis=1, keepdims=True))
        return min_pos, max_neg

    min_pos, max_neg = jax.lax.fori_loop(
        0, nchunks, pass1,
        (jnp.full((tq, 1), big, jnp.float32),
         jnp.full((tq, 1), -big, jnp.float32)))

    # Margin tests folded into one per-row threshold on d = sim - THRESH:
    #   keep pos iff  (mpos - THRESH) < max_neg + (MARGIN - THRESH)
    #   keep neg iff  (mneg - THRESH) > min_pos - (MARGIN + THRESH)
    pos_gate = max_neg + (MARGIN - THRESH)                  # (tq, 1)
    neg_gate = min_pos - (MARGIN + THRESH)                  # (tq, 1)

    # ---------------- pass 2: margin-gated exp sums ---------------------------
    def pass2(c, carry):
        pos_sum, neg_sum = carry
        c0 = pl.multiple_of(c * chunk, 128)
        d_pos = pos_scr[:, pl.ds(c0, chunk)] - THRESH
        d_neg = neg_scr[:, pl.ds(c0, chunk)] - THRESH
        pos_term = jnp.where(d_pos < pos_gate,
                             jnp.exp(-SCALE_POS * d_pos), 0.0)
        neg_term = jnp.where(d_neg > neg_gate,
                             jnp.exp(SCALE_NEG * d_neg), 0.0)
        pos_sum = pos_sum + jnp.sum(pos_term, axis=1, keepdims=True)
        neg_sum = neg_sum + jnp.sum(neg_term, axis=1, keepdims=True)
        return pos_sum, neg_sum

    pos_sum, neg_sum = jax.lax.fori_loop(
        0, nchunks, pass2,
        (jnp.zeros((tq, 1), jnp.float32), jnp.zeros((tq, 1), jnp.float32)))

    row_loss = ((1.0 / SCALE_POS) * jnp.log(1.0 + pos_sum)
                + (1.0 / SCALE_NEG) * jnp.log(1.0 + neg_sum))

    # Every skip / early-return of the reference collapses to these tests
    # (all kept exp terms are strictly positive, so sum>0 <=> non-empty set).
    valid = jnp.logical_and(
        sel_row_ref[...] != 0,
        jnp.logical_and(pos_sum > 0.0, neg_sum > 0.0))
    out_ref[...] = jnp.where(valid, row_loss, 0.0)


def multi_similarity_loss(feats, labels, score, type_str, *, tq_max=None,
                          col_chunk=None):
    """Pallas implementation of MultiSimilarityLoss.forward."""
    if type_str not in _TYPE_IDX:
        raise TypeError(type_str)
    assert feats.shape[0] == labels.shape[0]
    B, D = feats.shape

    # --- tiny XLA glue: type selection + L2 normalization (rsqrt) -------------
    index = jnp.argmax(score, axis=-1)
    sel = (index == _TYPE_IDX[type_str]).astype(jnp.int32)           # (B,)

    x = feats.astype(jnp.float32)
    sumsq = jnp.sum(x * x, axis=1, keepdims=True)
    xn = x * jax.lax.rsqrt(jnp.maximum(sumsq, 1e-24))                # == x / max(|x|,1e-12)
    # bf16 inputs -> bf16 MXU operands (f32 accumulate); f32 inputs stay f32.
    # TODO(synk): optionally cast f32->bf16 for large D after validating the
    #             margin / 1-eps / threshold comparisons against the reference.
    mm_dtype = jnp.bfloat16 if feats.dtype == jnp.bfloat16 else jnp.float32
    xn = xn.astype(mm_dtype)
    labels_i = labels.astype(jnp.int32)

    # --- generation-aware, adaptive row tiling --------------------------------
    auto_tq_max, vmem_limit = _chip_tuning()
    tq_cap = int(tq_max) if tq_max is not None else auto_tq_max
    tq_cap = max(8, _round_up(tq_cap, 8))

    g = max(2, _cdiv(B, tq_cap))                 # >=2 steps for megacore when possible
    tq = min(_round_up(_cdiv(B, g), 8), tq_cap)  # <8 rows of padding waste
    g = _cdiv(B, tq)
    bp_r = g * tq
    pad_r = bp_r - B

    q_rows = jnp.pad(xn, ((0, pad_r), (0, 0)))                       # (bp_r, D)
    sel_row = jnp.pad(sel, (0, pad_r)).reshape(bp_r, 1)
    lab_row = jnp.pad(labels_i, (0, pad_r), constant_values=-1).reshape(bp_r, 1)

    # Columns (keys) are padded independently of the rows, to a lane-aligned
    # multiple of the in-kernel chunk width.  Keys are transposed ONCE here so
    # the kernel matmul needs no per-step relayout.
    if col_chunk is not None:
        chunk = max(128, _round_up(int(col_chunk), 128))
        bp_c = _round_up(B, chunk)
    else:
        bp_c = _round_up(B, 128)
        chunk = 512 if bp_c % 512 == 0 else (256 if bp_c % 256 == 0 else 128)
    nchunks = bp_c // chunk
    pad_c = bp_c - B

    kt = jnp.pad(xn, ((0, pad_c), (0, 0))).T                         # (D, bp_c)
    sel_col = jnp.pad(sel, (0, pad_c)).reshape(1, bp_c)
    lab_col = jnp.pad(labels_i, (0, pad_c), constant_values=-1).reshape(1, bp_c)
    col_idx = jnp.arange(bp_c, dtype=jnp.int32).reshape(1, bp_c)

    kernel = functools.partial(_ms_loss_kernel, tq=tq, chunk=chunk,
                               nchunks=nchunks)

    row_loss = pl.pallas_call(
        kernel,
        out_shape=jax.ShapeDtypeStruct((bp_r, 1), jnp.float32),
        grid=(g,),
        in_specs=[
            pl.BlockSpec((tq, D), lambda i: (i, 0)),       # query rows (pipelined)
            pl.BlockSpec((D, bp_c), lambda i: (0, 0)),     # keys^T (resident)
            pl.BlockSpec((tq, 1), lambda i: (i, 0)),       # selection, row layout
            pl.BlockSpec((1, bp_c), lambda i: (0, 0)),     # selection, col layout
            pl.BlockSpec((tq, 1), lambda i: (i, 0)),       # labels, row layout
            pl.BlockSpec((1, bp_c), lambda i: (0, 0)),     # labels, col layout
            pl.BlockSpec((1, bp_c), lambda i: (0, 0)),     # column indices
        ],
        out_specs=pl.BlockSpec((tq, 1), lambda i: (i, 0)),
        scratch_shapes=[pltpu.VMEM((tq, bp_c), jnp.float32),   # masked positives
                        pltpu.VMEM((tq, bp_c), jnp.float32)],  # masked negatives
        compiler_params=pltpu.CompilerParams(
            dimension_semantics=("parallel",),             # megacore row split
            vmem_limit_bytes=vmem_limit),
    )(q_rows, kt, sel_row, sel_col, lab_row, lab_col, col_idx)

    # Padded / invalid rows contribute exactly 0; divide by the TRUE batch size.
    return jnp.sum(row_loss) / jnp.float32(B)


def _reference(feats, labels, score, type_str, margin=MARGIN):
    """Pure numpy port of the PyTorch forward (dynamic loop), for checking."""
    feats = np.asarray(feats, dtype=np.float64)
    labels = np.asarray(labels)
    score = np.asarray(score)
    batch_size = feats.shape[0]
    norm = np.maximum(np.linalg.norm(feats, axis=1, keepdims=True), 1e-12)
    fn = feats / norm
    sim = fn @ fn.T
    idx = np.argmax(score, axis=-1)
    tmp = idx == _TYPE_IDX[type_str]
    if tmp.sum() < 2:
        return 0.0
    lab = labels[tmp]
    sm = sim[tmp][:, tmp]
    eps = 1e-5
    bs = int(tmp.sum())
    losses = []
    mask = lab[:, None] == lab[None, :]
    for i in range(bs):
        if mask[i].sum() <= 1:
            continue
        pos_pair_ = sm[i][mask[i]]
        pos_pair_ = pos_pair_[pos_pair_ < 1 - eps]
        neg_pair_ = sm[i][~mask[i]]
        if len(pos_pair_) == 0 or len(neg_pair_) == 0:
            continue
        neg_pair = neg_pair_[neg_pair_ + margin > pos_pair_.min()]
        pos_pair = pos_pair_[pos_pair_ - margin < neg_pair_.max()]
        if len(neg_pair) < 1 or len(pos_pair) < 1:
            continue
        pos_loss = 1.0 / SCALE_POS * np.log(
            1 + np.sum(np.exp(-SCALE_POS * (pos_pair - THRESH))))
        neg_loss = 1.0 / SCALE_NEG * np.log(
            1 + np.sum(np.exp(SCALE_NEG * (neg_pair - THRESH))))
        losses.append(pos_loss + neg_loss)
    if not losses:
        return 0.0
    return float(sum(losses) / batch_size)


if __name__ == "__main__":
    keys = jax.random.split(jax.random.PRNGKey(0), 9)

    # 1) Small case covering all type branches (incl. "<2 selected -> 0" path).
    B, D = 8, 128
    feats = jax.random.normal(keys[0], (B, D), dtype=jnp.float32)
    labels = jax.random.randint(keys[1], (B,), 0, 3, dtype=jnp.int32)
    score = jax.random.normal(keys[2], (B, 3), dtype=jnp.float32)
    for t in ("ly", "si", "st"):
        loss = jax.block_until_ready(multi_similarity_loss(feats, labels, score, t))
        ref = _reference(feats, labels, score, t)
        assert np.allclose(float(loss), ref, atol=5e-3, rtol=5e-3), (t, float(loss), ref)

    # 2) Multi-row-tile case (small forced tq -> 5 grid steps).
    B2, D2 = 40, 128
    feats2 = jax.random.normal(keys[3], (B2, D2), dtype=jnp.float32)
    labels2 = jax.random.randint(keys[4], (B2,), 0, 4, dtype=jnp.int32)
    score2 = jax.random.normal(keys[5], (B2, 3), dtype=jnp.float32)
    loss2 = jax.block_until_ready(
        multi_similarity_loss(feats2, labels2, score2, "si", tq_max=8))
    ref2 = _reference(feats2, labels2, score2, "si")
    assert np.allclose(float(loss2), ref2, atol=5e-3, rtol=5e-3), (float(loss2), ref2)

    # 3) Multi-column-chunk case (forced 128-wide chunks -> 2 key chunks,
    #    2 row tiles, padded rows and padded columns).
    B3, D3 = 200, 128
    feats3 = jax.random.normal(keys[6], (B3, D3), dtype=jnp.float32)
    labels3 = jax.random.randint(keys[7], (B3,), 0, 5, dtype=jnp.int32)
    score3 = jax.random.normal(keys[8], (B3, 3), dtype=jnp.float32)
    loss3 = jax.block_until_ready(
        multi_similarity_loss(feats3, labels3, score3, "st", col_chunk=128))
    ref3 = _reference(feats3, labels3, score3, "st")
    assert np.allclose(float(loss3), ref3, atol=5e-3, rtol=5e-3), (float(loss3), ref3)

    print("KERNEL_OK")
</pallas_src>

<mosaic_0001>
module attributes {stable_mosaic.version = 11 : i64} {
  func.func @_ms_loss_kernel(%arg0: i32, %arg1: memref<8x128xf32, #tpu.memory_space<vmem>>, %arg2: memref<128x128xf32, #tpu.memory_space<vmem>>, %arg3: memref<8x1xi32, #tpu.memory_space<vmem>>, %arg4: memref<1x128xi32, #tpu.memory_space<vmem>>, %arg5: memref<8x1xi32, #tpu.memory_space<vmem>>, %arg6: memref<1x128xi32, #tpu.memory_space<vmem>>, %arg7: memref<1x128xi32, #tpu.memory_space<vmem>>, %arg8: memref<8x1xf32, #tpu.memory_space<vmem>>, %arg9: memref<8x128xf32, #tpu.memory_space<vmem>>, %arg10: memref<8x128xf32, #tpu.memory_space<vmem>>) attributes {dimension_semantics = [#tpu.dimension_semantics<parallel>], iteration_bounds = array<i64: 1>, scalar_prefetch = 0 : i64, scratch_operands = 2 : i64, tpu.core_type = #tpu.core_type<tc>, window_params = [{transform_indices = @transform_0, window_bounds = array<i64: 8, 128>}, {pipeline_mode = #tpu.pipeline_mode<synchronous>, transform_indices = @transform_1, window_bounds = array<i64: 128, 128>}, {transform_indices = @transform_2, window_bounds = array<i64: 8, 1>}, {pipeline_mode = #tpu.pipeline_mode<synchronous>, transform_indices = @transform_3, window_bounds = array<i64: 1, 128>}, {transform_indices = @transform_4, window_bounds = array<i64: 8, 1>}, {pipeline_mode = #tpu.pipeline_mode<synchronous>, transform_indices = @transform_5, window_bounds = array<i64: 1, 128>}, {pipeline_mode = #tpu.pipeline_mode<synchronous>, transform_indices = @transform_6, window_bounds = array<i64: 1, 128>}, {transform_indices = @transform_7, window_bounds = array<i64: 8, 1>}]} {
    %c0 = arith.constant 0 : index
    %c0_0 = arith.constant 0 : index
    %0 = vector.load %arg1[%c0, %c0_0] : memref<8x128xf32, #tpu.memory_space<vmem>>, vector<8x128xf32>
    %c0_1 = arith.constant 0 : index
    %c0_2 = arith.constant 0 : index
    %1 = vector.load %arg5[%c0_1, %c0_2] : memref<8x1xi32, #tpu.memory_space<vmem>>, vector<8x1xi32>
    %c8_i32 = arith.constant 8 : i32
    %2 = arith.muli %arg0, %c8_i32 : i32
    %3 = tpu.iota {dimensions = array<i32: 0>} : vector<8x1xi32>
    %4 = vector.broadcast %2 : i32 to vector<8x1xi32>
    %5 = arith.addi %4, %3 : vector<8x1xi32>
    %cst = arith.constant 1.000000e+30 : f32
    %6 = vector.broadcast %cst : f32 to vector<8x1xf32>
    %cst_3 = arith.constant 0.000000e+00 : f32
    %cst_4 = arith.constant 1.000000e+30 : f32
    %7 = arith.subf %cst_3, %cst_4 : f32
    %8 = vector.broadcast %7 : f32 to vector<8x1xf32>
    %cst_5 = arith.constant 1.000000e+30 : f32
    %c0_i32 = arith.constant 0 : i32
    %c128_i32 = arith.constant 128 : i32
    %9 = arith.muli %c0_i32, %c128_i32 : i32
    %10 = tpu.assume_multiple %9, 128 : i32
    %c0_6 = arith.constant 0 : index
    %11 = arith.index_cast %10 : i32 to index
    %12 = vector.load %arg2[%c0_6, %11] : memref<128x128xf32, #tpu.memory_space<vmem>>, vector<128x128xf32>
    %cst_7 = arith.constant dense<0.000000e+00> : vector<8x128xf32>
    %13 = tpu.matmul %0, %12, %cst_7 {dimension_numbers = #tpu.dot_dimension_numbers<[1], [0], [0], [1], [0, 0, 1, 1], [], []>} : vector<8x128xf32>, vector<128x128xf32>, vector<8x128xf32> -> vector<8x128xf32>
    %c0_8 = arith.constant 0 : index
    %14 = arith.index_cast %10 : i32 to index
    %15 = vector.load %arg4[%c0_8, %14] : memref<1x128xi32, #tpu.memory_space<vmem>>, vector<1x128xi32>
    %c0_i32_9 = arith.constant 0 : i32
    %16 = vector.broadcast %c0_i32_9 : i32 to vector<1x128xi32>
    %17 = arith.cmpi ne, %15, %16 : vector<1x128xi32>
    %c0_10 = arith.constant 0 : index
    %18 = arith.index_cast %10 : i32 to index
    %19 = vector.load %arg6[%c0_10, %18] : memref<1x128xi32, #tpu.memory_space<vmem>>, vector<1x128xi32>
    %c0_11 = arith.constant 0 : index
    %20 = arith.index_cast %10 : i32 to index
    %21 = vector.load %arg7[%c0_11, %20] : memref<1x128xi32, #tpu.memory_space<vmem>>, vector<1x128xi32>
    %22 = vector.broadcast %1 : vector<8x1xi32> to vector<8x128xi32>
    %23 = vector.broadcast %19 : vector<1x128xi32> to vector<8x128xi32>
    %24 = arith.cmpi eq, %22, %23 : vector<8x128xi32>
    %25 = vector.broadcast %17 : vector<1x128xi1> to vector<8x128xi1>
    %26 = arith.andi %25, %24 : vector<8x128xi1>
    %27 = vector.broadcast %5 : vector<8x1xi32> to vector<8x128xi32>
    %28 = vector.broadcast %21 : vector<1x128xi32> to vector<8x128xi32>
    %29 = arith.cmpi ne, %27, %28 : vector<8x128xi32>
    %cst_12 = arith.constant 0.999989986 : f32
    %30 = vector.broadcast %cst_12 : f32 to vector<8x128xf32>
    %31 = arith.cmpf olt, %13, %30 : vector<8x128xf32>
    %32 = arith.andi %29, %31 : vector<8x128xi1>
    %33 = arith.andi %26, %32 : vector<8x128xi1>
    %34 = vector.broadcast %17 : vector<1x128xi1> to vector<8x128xi1>
    %35 = arith.xori %34, %26 : vector<8x128xi1>
    %36 = vector.broadcast %cst_5 : f32 to vector<8x128xf32>
    %37 = arith.select %33, %13, %36 : vector<8x128xi1>, vector<8x128xf32>
    %cst_13 = arith.constant 0.000000e+00 : f32
    %38 = arith.subf %cst_13, %cst_5 : f32
    %39 = vector.broadcast %38 : f32 to vector<8x128xf32>
    %40 = arith.select %35, %13, %39 : vector<8x128xi1>, vector<8x128xf32>
    %c0_14 = arith.constant 0 : index
    %41 = arith.index_cast %10 : i32 to index
    %42 = vector.load %arg9[%c0_14, %41] : memref<8x128xf32, #tpu.memory_space<vmem>>, vector<8x128xf32>
    tpu.vector_store %arg9[%c0_14, %41], %37 {strides = array<i32>} : memref<8x128xf32, #tpu.memory_space<vmem>>, vector<8x128xf32>,
    %c0_15 = arith.constant 0 : index
    %43 = arith.index_cast %10 : i32 to index
    %44 = vector.load %arg10[%c0_15, %43] : memref<8x128xf32, #tpu.memory_space<vmem>>, vector<8x128xf32>
    tpu.vector_store %arg10[%c0_15, %43], %40 {strides = array<i32>} : memref<8x128xf32, #tpu.memory_space<vmem>>, vector<8x128xf32>,
    %cst_16 = arith.constant dense<0x7F800000> : vector<8xf32>
    %45 = vector.multi_reduction <minimumf>, %37, %cst_16 [1] : vector<8x128xf32> to vector<8xf32>
    %46 = vector.shape_cast %45 : vector<8xf32> to vector<8x1xf32>
    %47 = arith.minimumf %6, %46 : vector<8x1xf32>
    %cst_17 = arith.constant dense<0xFF800000> : vector<8xf32>
    %48 = vector.multi_reduction <maximumf>, %40, %cst_17 [1] : vector<8x128xf32> to vector<8xf32>
    %49 = vector.shape_cast %48 : vector<8xf32> to vector<8x1xf32>
    %50 = arith.maximumf %8, %49 : vector<8x1xf32>
    %c1_i32 = arith.constant 1 : i32
    %cst_18 = arith.constant -4.000000e-01 : f32
    %51 = vector.broadcast %cst_18 : f32 to vector<8x1xf32>
    %52 = arith.addf %50, %51 : vector<8x1xf32>
    %cst_19 = arith.constant 6.000000e-01 : f32
    %53 = vector.broadcast %cst_19 : f32 to vector<8x1xf32>
    %54 = arith.subf %47, %53 : vector<8x1xf32>
    %cst_20 = arith.constant 0.000000e+00 : f32
    %55 = vector.broadcast %cst_20 : f32 to vector<8x1xf32>
    %cst_21 = arith.constant 0.000000e+00 : f32
    %56 = vector.broadcast %cst_21 : f32 to vector<8x1xf32>
    %c0_i32_22 = arith.constant 0 : i32
    %c128_i32_23 = arith.constant 128 : i32
    %57 = arith.muli %c0_i32_22, %c128_i32_23 : i32
    %58 = tpu.assume_multiple %57, 128 : i32
    %c0_24 = arith.constant 0 : index
    %59 = arith.index_cast %58 : i32 to index
    %60 = vector.load %arg9[%c0_24, %59] : memref<8x128xf32, #tpu.memory_space<vmem>>, vector<8x128xf32>
    %cst_25 = arith.constant 5.000000e-01 : f32
    %61 = vector.broadcast %cst_25 : f32 to vector<8x128xf32>
    %62 = arith.subf %60, %61 : vector<8x128xf32>
    %c0_26 = arith.constant 0 : index
    %63 = arith.index_cast %58 : i32 to index
    %64 = vector.load %arg10[%c0_26, %63] : memref<8x128xf32, #tpu.memory_space<vmem>>, vector<8x128xf32>
    %cst_27 = arith.constant 5.000000e-01 : f32
    %65 = vector.broadcast %cst_27 : f32 to vector<8x128xf32>
    %66 = arith.subf %64, %65 : vector<8x128xf32>
    %67 = vector.broadcast %52 : vector<8x1xf32> to vector<8x128xf32>
    %68 = arith.cmpf olt, %62, %67 : vector<8x128xf32>
    %cst_28 = arith.constant -2.000000e+00 : f32
    %69 = vector.broadcast %cst_28 : f32 to vector<8x128xf32>
    %70 = arith.mulf %69, %62 : vector<8x128xf32>
    %71 = math.exp %70 : vector<8x128xf32>
    %cst_29 = arith.constant 0.000000e+00 : f32
    %72 = vector.broadcast %cst_29 : f32 to vector<8x128xf32>
    %73 = arith.select %68, %71, %72 : vector<8x128xi1>, vector<8x128xf32>
    %74 = vector.broadcast %54 : vector<8x1xf32> to vector<8x128xf32>
    %75 = arith.cmpf ogt, %66, %74 : vector<8x128xf32>
    %cst_30 = arith.constant 4.000000e+01 : f32
    %76 = vector.broadcast %cst_30 : f32 to vector<8x128xf32>
    %77 = arith.mulf %76, %66 : vector<8x128xf32>
    %78 = math.exp %77 : vector<8x128xf32>
    %cst_31 = arith.constant 0.000000e+00 : f32
    %79 = vector.broadcast %cst_31 : f32 to vector<8x128xf32>
    %80 = arith.select %75, %78, %79 : vector<8x128xi1>, vector<8x128xf32>
    %cst_32 = arith.constant dense<0.000000e+00> : vector<8xf32>
    %81 = vector.multi_reduction <add>, %73, %cst_32 [1] : vector<8x128xf32> to vector<8xf32>
    %82 = vector.shape_cast %81 : vector<8xf32> to vector<8x1xf32>
    %83 = arith.addf %55, %82 : vector<8x1xf32>
    %cst_33 = arith.constant dense<0.000000e+00> : vector<8xf32>
    %84 = vector.multi_reduction <add>, %80, %cst_33 [1] : vector<8x128xf32> to vector<8xf32>
    %85 = vector.shape_cast %84 : vector<8xf32> to vector<8x1xf32>
    %86 = arith.addf %56, %85 : vector<8x1xf32>
    %c1_i32_34 = arith.constant 1 : i32
    %cst_35 = arith.constant 1.000000e+00 : f32
    %87 = vector.broadcast %cst_35 : f32 to vector<8x1xf32>
    %88 = arith.addf %87, %83 : vector<8x1xf32>
    %89 = math.log %88 : vector<8x1xf32>
    %cst_36 = arith.constant 5.000000e-01 : f32
    %90 = vector.broadcast %cst_36 : f32 to vector<8x1xf32>
    %91 = arith.mulf %90, %89 : vector<8x1xf32>
    %cst_37 = arith.constant 1.000000e+00 : f32
    %92 = vector.broadcast %cst_37 : f32 to vector<8x1xf32>
    %93 = arith.addf %92, %86 : vector<8x1xf32>
    %94 = math.log %93 : vector<8x1xf32>
    %cst_38 = arith.constant 2.500000e-02 : f32
    %95 = vector.broadcast %cst_38 : f32 to vector<8x1xf32>
    %96 = arith.mulf %95, %94 : vector<8x1xf32>
    %97 = arith.addf %91, %96 : vector<8x1xf32>
    %c0_39 = arith.constant 0 : index
    %c0_40 = arith.constant 0 : index
    %98 = vector.load %arg3[%c0_39, %c0_40] : memref<8x1xi32, #tpu.memory_space<vmem>>, vector<8x1xi32>
    %c0_i32_41 = arith.constant 0 : i32
    %99 = vector.broadcast %c0_i32_41 : i32 to vector<8x1xi32>
    %100 = arith.cmpi ne, %98, %99 : vector<8x1xi32>
    %cst_42 = arith.constant 0.000000e+00 : f32
    %101 = vector.broadcast %cst_42 : f32 to vector<8x1xf32>
    %102 = arith.cmpf ogt, %83, %101 : vector<8x1xf32>
    %cst_43 = arith.constant 0.000000e+00 : f32
    %103 = vector.broadcast %cst_43 : f32 to vector<8x1xf32>
    %104 = arith.cmpf ogt, %86, %103 : vector<8x1xf32>
    %105 = arith.andi %102, %104 : vector<8x1xi1>
    %106 = arith.andi %100, %105 : vector<8x1xi1>
    %cst_44 = arith.constant 0.000000e+00 : f32
    %107 = vector.broadcast %cst_44 : f32 to vector<8x1xf32>
    %108 = arith.select %106, %97, %107 : vector<8x1xi1>, vector<8x1xf32>
    %c0_45 = arith.constant 0 : index
    %c0_46 = arith.constant 0 : index
    %109 = vector.load %arg8[%c0_45, %c0_46] : memref<8x1xf32, #tpu.memory_space<vmem>>, vector<8x1xf32>
    tpu.vector_store %arg8[%c0_45, %c0_46], %108 {strides = array<i32>} : memref<8x1xf32, #tpu.memory_space<vmem>>, vector<8x1xf32>,
    return
  }
  func.func @transform_0(%arg0: i32) -> (i32, i32) {
    %c0_i32 = arith.constant 0 : i32
    %c0_i32_0 = arith.constant 0 : i32
    return %arg0, %c0_i32 : i32, i32
  }
  func.func @transform_1(%arg0: i32) -> (i32, i32) {
    %c0_i32 = arith.constant 0 : i32
    %c0_i32_0 = arith.constant 0 : i32
    %c0_i32_1 = arith.constant 0 : i32
    return %c0_i32, %c0_i32_0 : i32, i32
  }
  func.func @transform_2(%arg0: i32) -> (i32, i32) {
    %c0_i32 = arith.constant 0 : i32
    %c0_i32_0 = arith.constant 0 : i32
    return %arg0, %c0_i32 : i32, i32
  }
  func.func @transform_3(%arg0: i32) -> (i32, i32) {
    %c0_i32 = arith.constant 0 : i32
    %c0_i32_0 = arith.constant 0 : i32
    %c0_i32_1 = arith.constant 0 : i32
    return %c0_i32, %c0_i32_0 : i32, i32
  }
  func.func @transform_4(%arg0: i32) -> (i32, i32) {
    %c0_i32 = arith.constant 0 : i32
    %c0_i32_0 = arith.constant 0 : i32
    return %arg0, %c0_i32 : i32, i32
  }
  func.func @transform_5(%arg0: i32) -> (i32, i32) {
    %c0_i32 = arith.constant 0 : i32
    %c0_i32_0 = arith.constant 0 : i32
    %c0_i32_1 = arith.constant 0 : i32
    return %c0_i32, %c0_i32_0 : i32, i32
  }
  func.func @transform_6(%arg0: i32) -> (i32, i32) {
    %c0_i32 = arith.constant 0 : i32
    %c0_i32_0 = arith.constant 0 : i32
    %c0_i32_1 = arith.constant 0 : i32
    return %c0_i32, %c0_i32_0 : i32, i32
  }
  func.func @transform_7(%arg0: i32) -> (i32, i32) {
    %c0_i32 = arith.constant 0 : i32
    %c0_i32_0 = arith.constant 0 : i32
    return %arg0, %c0_i32 : i32, i32
  }
}

</mosaic_0001>

<llo_original>
// kernel: tpu_custom_call.1
$region0: #{tpu_custom_call.1}
  #allocation0 [shape = 'u32[]', space=smem, size = 0x4, offset = 0x4, fixed_abs, tag = 'smem constant byte address 0x4 - core index']
  #allocation1 [shape = 'u32[144,128]{1,0:T(1,128)}', space=vmem, size = 0x12000, scoped, tag = 'internal scratch']
  #allocation2 [shape = 'f32[8,128]{1,0:T(8,128)}', space=vmem, size = 0x1000, scoped, tag = 'scratch operand']
  #allocation3 [shape = 'f32[8,128]{1,0:T(8,128)}', space=vmem, size = 0x1000, scoped, tag = 'scratch operand']
  %s0 = inlined_call_operand.vmem [shape: f32[8,128], index: 0, kind: input, shape index: {}]
  %s1 = inlined_call_operand.hbm [shape: f32[128,128], index: 1, kind: input, shape index: {}]
  %s2 = inlined_call_operand.vmem [shape: s32[8,1], index: 2, kind: input, shape index: {}]
  %s3 = inlined_call_operand.vmem [shape: s32[1,128], index: 3, kind: input, shape index: {}]
  %s4 = inlined_call_operand.vmem [shape: s32[8,1], index: 4, kind: input, shape index: {}]
  %s5 = inlined_call_operand.vmem [shape: s32[1,128], index: 5, kind: input, shape index: {}]
  %s6 = inlined_call_operand.vmem [shape: s32[1,128], index: 6, kind: input, shape index: {}]
  %s7 = inlined_call_operand.vmem [shape: f32[8,1], index: 7, kind: output, shape index: {}]
  %s8 = sld [smem:[#allocation0]]
  $region42: #{tpu_custom_call.1} parent=0
    _
  %s10 = ssub.s32 1, %s8
  %s11 = scalar_select 0, %s10, %s8
  $region1: #{tpu_custom_call.1} parent=0
    #allocation4 [shape = 'u8[65536]{0}', space=vmem, size = 0x10000, scoped, tag = 'input window, operand 1, single buffered']
    #allocation5 [shape = 's32[1]{0}', space=sflag, size = 0x4, scoped, tag = 'scoped memory for tpu_custom_call.1']
    %12 = vsyncpa [#allocation5], 0
    // Predicated region
    $region2: #{tpu_custom_call.1} parent=1 // pred_check
      _
    $region3: #{tpu_custom_call.1} parent=1 // pred_check_branch
      %14 = sbr.rel (0) target = $region5
    $region4: #{tpu_custom_call.1} parent=1 // pred_region
      _
    $region5: #{tpu_custom_call.1} parent=1 // pred_fallthru
      _
    // Predicated region
    $region6: #{tpu_custom_call.1} parent=1 // pred_check
      _
    $region7: #{tpu_custom_call.1} parent=1 // pred_check_branch
      %16 = sbr.rel (0) target = $region9
    $region8: #{tpu_custom_call.1} parent=1 // pred_region
      %s18 = ssub.s32 2048, 2048
      %19 = vsyncadd [#allocation5], %s18
      %s20 = sshll.u32 [#allocation4], 4
      %s21 = int_to_ptr.vmem [resolvable:$true] %s20
      %26 = dma.hbm_to_vmem [thread:$0]  %s1, 2048, %s21, [#allocation5], 128, 128, 8
    $region9: #{tpu_custom_call.1} parent=1 // pred_fallthru
      _
    // Predicated region
    $region10: #{tpu_custom_call.1} parent=1 // pred_check
      _
    $region11: #{tpu_custom_call.1} parent=1 // pred_check_branch
      %28 = sbr.rel (0) target = $region13
    $region12: #{tpu_custom_call.1} parent=1 // pred_region
      _
    $region13: #{tpu_custom_call.1} parent=1 // pred_fallthru
      _
    // Predicated region
    $region14: #{tpu_custom_call.1} parent=1 // pred_check
      _
    $region15: #{tpu_custom_call.1} parent=1 // pred_check_branch
      %30 = sbr.rel (0) target = $region17
    $region16: #{tpu_custom_call.1} parent=1 // pred_region
      _
    $region17: #{tpu_custom_call.1} parent=1 // pred_fallthru
      _
    // Predicated region
    $region18: #{tpu_custom_call.1} parent=1 // pred_check
      _
    $region19: #{tpu_custom_call.1} parent=1 // pred_check_branch
      %32 = sbr.rel (0) target = $region21
    $region20: #{tpu_custom_call.1} parent=1 // pred_region
      _
    $region21: #{tpu_custom_call.1} parent=1 // pred_fallthru
      _
    // Predicated region
    $region22: #{tpu_custom_call.1} parent=1 // pred_check
      _
    $region23: #{tpu_custom_call.1} parent=1 // pred_check_branch
      %34 = sbr.rel (0) target = $region25
    $region24: #{tpu_custom_call.1} parent=1 // pred_region
      _
    $region25: #{tpu_custom_call.1} parent=1 // pred_fallthru
      _
    // Predicated region
    $region26: #{tpu_custom_call.1} parent=1 // pred_check
      _
    $region27: #{tpu_custom_call.1} parent=1 // pred_check_branch
      %36 = sbr.rel (0) target = $region29
    $region28: #{tpu_custom_call.1} parent=1 // pred_region
      _
    $region29: #{tpu_custom_call.1} parent=1 // pred_fallthru
      _
    // Predicated region
    $region30: #{tpu_custom_call.1} parent=1 // pred_check
      _
    $region31: #{tpu_custom_call.1} parent=1 // pred_check_branch
      %38 = sbr.rel (0) target = $region33
    $region32: #{tpu_custom_call.1} parent=1 // pred_region
      %39 = dma.done [#allocation5], 2048
    $region33: #{tpu_custom_call.1} parent=1 // pred_fallthru
      _
    %v40 = vld [vmem:[%s0] sm:$0xff]
    %v41 = vld [vmem:[%s4] sm:$0xff]
    %s42 = smul.u32 0, 8
    %v43 = vlaneseq
    %v44 = vshrl.u32 %v43, 7
    %v45 = vstv %s42
    %v46 = vadd.s32 %v45, %v44
    %v47 = vld [vmem:[#allocation4] sm:$0xff]
    %v48 = vld [vmem:[#allocation4 + $0x8] sm:$0xff]
    %v49 = vld [vmem:[#allocation4 + $0x10] sm:$0xff]
    %v50 = vld [vmem:[#allocation4 + $0x18] sm:$0xff]
    %v51 = vld [vmem:[#allocation4 + $0x20] sm:$0xff]
    %v52 = vld [vmem:[#allocation4 + $0x28] sm:$0xff]
    %v53 = vld [vmem:[#allocation4 + $0x30] sm:$0xff]
    %v54 = vld [vmem:[#allocation4 + $0x38] sm:$0xff]
    %v55 = vld [vmem:[#allocation4 + $0x40] sm:$0xff]
    %v56 = vld [vmem:[#allocation4 + $0x48] sm:$0xff]
    %v57 = vld [vmem:[#allocation4 + $0x50] sm:$0xff]
    %v58 = vld [vmem:[#allocation4 + $0x58] sm:$0xff]
    %v59 = vld [vmem:[#allocation4 + $0x60] sm:$0xff]
    %v60 = vld [vmem:[#allocation4 + $0x68] sm:$0xff]
    %v61 = vld [vmem:[#allocation4 + $0x70] sm:$0xff]
    %v62 = vld [vmem:[#allocation4 + $0x78] sm:$0xff]
    %63 = vmatprep.subr.mxu0 0.0
    %64 = vmatpush1.msra.mxu0 %v47
    %65 = vmatprep.subr.mxu0 0.0
    %66 = vmatpush1.msra.mxu0 %v48
    %67 = vmatprep.subr.mxu0 0.0
    %68 = vmatpush1.msra.mxu0 %v49
    %69 = vmatprep.subr.mxu0 0.0
    %70 = vmatpush1.msra.mxu0 %v50
    %71 = vmatprep.subr.mxu0 0.0
    %72 = vmatpush1.msra.mxu0 %v51
    %73 = vmatprep.subr.mxu0 0.0
    %74 = vmatpush1.msra.mxu0 %v52
    %75 = vmatprep.subr.mxu0 0.0
    %76 = vmatpush1.msra.mxu0 %v53
    %77 = vmatprep.subr.mxu0 0.0
    %78 = vmatpush1.msra.mxu0 %v54
    %79 = vmatprep.subr.mxu0 0.0
    %80 = vmatpush1.msra.mxu0 %v55
    %81 = vmatprep.subr.mxu0 0.0
    %82 = vmatpush1.msra.mxu0 %v56
    %83 = vmatprep.subr.mxu0 0.0
    %84 = vmatpush1.msra.mxu0 %v57
    %85 = vmatprep.subr.mxu0 0.0
    %86 = vmatpush1.msra.mxu0 %v58
    %87 = vmatprep.subr.mxu0 0.0
    %88 = vmatpush1.msra.mxu0 %v59
    %89 = vmatprep.subr.mxu0 0.0
    %90 = vmatpush1.msra.mxu0 %v60
    %91 = vmatprep.subr.mxu0 0.0
    %92 = vmatpush1.msra.mxu0 %v61
    %93 = vmatprep.subr.mxu0 0.0
    %94 = vmatpush1.msra.mxu0 %v62
    %95 = vmatprep.subr.mxu0 0.0
    %96 = vmatpush1.msra.mxu0 0.0
    %97 = vmatprep.subr.mxu0 0.0
    %98 = vmatpush1.msra.mxu0 0.0
    %99 = vmatprep.subr.mxu0 0.0
    %100 = vmatpush1.msra.mxu0 0.0
    %101 = vmatprep.subr.mxu0 0.0
    %102 = vmatpush1.msra.mxu0 0.0
    %103 = vmatprep.subr.mxu0 0.0
    %104 = vmatpush1.msra.mxu0 0.0
    %105 = vmatprep.subr.mxu0 0.0
    %106 = vmatpush1.msra.mxu0 0.0
    %107 = vmatprep.subr.mxu0 0.0
    %108 = vmatpush1.msra.mxu0 0.0
    %109 = vmatprep.subr.mxu0 0.0
    %110 = vmatpush1.msra.mxu0 0.0
    %111 = vmatprep.subr.mxu0 0.0
    %112 = vmatpush1.msra.mxu0 0.0
    %113 = vmatprep.subr.mxu0 0.0
    %114 = vmatpush1.msra.mxu0 0.0
    %115 = vmatprep.subr.mxu0 0.0
    %116 = vmatpush1.msra.mxu0 0.0
    %117 = vmatprep.subr.mxu0 0.0
    %118 = vmatpush1.msra.mxu0 0.0
    %119 = vmatprep.subr.mxu0 0.0
    %120 = vmatpush1.msra.mxu0 0.0
    %121 = vmatprep.subr.mxu0 0.0
    %122 = vmatpush1.msra.mxu0 0.0
    %123 = vmatprep.subr.mxu0 0.0
    %124 = vmatpush1.msra.mxu0 0.0
    %125 = vmatprep.subr.mxu0 0.0
    %126 = vmatpush1.msra.mxu0 0.0
    %127 = vmatprep.mubr.f32.mxu0 0.0
    %128 = vmatmul.mubr.f32.gmra.mrb[0].mxu0 %v40
    %v129 = vpop.f32.mrb[0].mxu0
    %v130 = vadd.f32 0.0, %v129
    %v131 = vpop.f32.mrb[0].mxu0
    %132 = vdwg.mxu0
    %v133 = vld [vmem:[%s3] sm:$0x1]
    %vm134 = vcmp.ne.s32.totalorder %v133, 0
    %v135 = vld [vmem:[%s5] sm:$0x1]
    %v136 = vld [vmem:[%s6] sm:$0x1]
    %137 = vset.pattern.permute.xlu0 0
    %138 = vperm.xlu0 %137, %v41
    %v139 = vpop.permute.xlu0 %138
    %v140 = vlaneseq
    %v141 = vshrl.u32 %v140, 7
    %v142 = vsub.s32 0, %v141
    %v143 = vrot.slane %v135, %v142
    %vm144 = vcmp.eq.s32.totalorder %v139, %v143
    %v145 = vsel %vm134, 1, 0
    %v146 = vlaneseq
    %v147 = vshrl.u32 %v146, 7
    %v148 = vsub.s32 0, %v147
    %v149 = vrot.slane %v145, %v148
    %vm150 = vcmp.eq.s32.totalorder %v149, 1
    %vm151 = vmand %vm150, %vm144
    %v152 = vlaneseq
    %v153 = vshrl.u32 %v152, 7
    %v154 = vsub.s32 0, %v153
    %v155 = vrot.slane %v136, %v154
    %vm156 = vcmp.ne.s32.totalorder %v46, %v155
    %vm157 = vcmp.lt.f32.partialorder %v130, 0.99999
    %vm158 = vmand %vm156, %vm157
    %vm159 = vmand %vm151, %vm158
    %vm160 = vmxor %vm150, %vm151
    %v161 = vsel %vm159, %v130, 1e+30
    %v162 = vsel %vm160, %v130, -1e+30
    %163 = vst [vmem:[#allocation2] sm:$0xff] %v161
    %164 = vst [vmem:[#allocation3] sm:$0xff] %v162
    %165 = vmin.xlane.f32.xlu0 %v161
    %v166 = vpop.xlane.xlu0 %165
    %v167 = vmin.f32 %v166, 1e+30
    %168 = vmax.xlane.f32.xlu0 %v162
    %v169 = vpop.xlane.xlu0 %168
    %v170 = vmax.f32 %v169, -1e+30
    %v171 = vadd.f32 %v170, -0.4
    %v172 = vsub.f32 %v167, 0.6
    %v173 = vld [vmem:[#allocation2] sm:$0xff]
    %v174 = vsub.f32 %v173, 0.5
    %v175 = vld [vmem:[#allocation3] sm:$0xff]
    %v176 = vsub.f32 %v175, 0.5
    %vm177 = vcmp.lt.f32.partialorder %v174, %v171
    %v178 = vmul.f32 %v174, -2.0
    %v179 = vmul.f32 %v178, 1.442695
    %v180 = vpow.pop %v179
    %v181 = vsel %vm177, %v180, 0.0
    %vm182 = vcmp.gt.f32.partialorder %v176, %v172
    %v183 = vmul.f32 %v176, 40.0
    %v184 = vmul.f32 %v183, 1.442695
    %v185 = vpow.pop %v184
    %v186 = vsel %vm182, %v185, 0.0
    %187 = vadd.xlane.f32.xlu0 %v181
    %v188 = vpop.xlane.xlu0 %187
    %v189 = vadd.f32 %v188, 0.0
    %190 = vadd.xlane.f32.xlu0 %v186
    %v191 = vpop.xlane.xlu0 %190
    %v192 = vadd.f32 %v191, 0.0
    %v193 = vadd.f32 %v189, 1.0
    %v194 = vlog2.pop %v193
    %v195 = vmul.f32 %v194, 0.6931472
    %v196 = vmul.f32 %v195, 0.5
    %v197 = vadd.f32 %v192, 1.0
    %v198 = vlog2.pop %v197
    %v199 = vmul.f32 %v198, 0.6931472
    %v200 = vmul.f32 %v199, 0.025
    %v201 = vadd.f32 %v196, %v200
    %v202 = vld [vmem:[%s2] sm:$0xff]
    %vm203 = vcmp.ne.s32.totalorder %v202, 0
    %vm204 = vcmp.gt.f32.partialorder %v189, 0.0
    %vm205 = vcmp.gt.f32.partialorder %v192, 0.0
    %vm206 = vmand %vm204, %vm205
    %vm207 = vmand %vm203, %vm206
    %v208 = vsel %vm207, %v201, 0.0
    %vm209 = vcmask 7168
    %210 = vst.msk [vmem:[%s7] sm:$0xff] %vm209, %v208
    // Predicated region
    $region34: #{tpu_custom_call.1} parent=1 // pred_check
      _
    $region35: #{tpu_custom_call.1} parent=1 // pred_check_branch
      %212 = sbr.rel (0) target = $region37
    $region36: #{tpu_custom_call.1} parent=1 // pred_region
      _
    $region37: #{tpu_custom_call.1} parent=1 // pred_fallthru
      _
    // Predicated region
    $region38: #{tpu_custom_call.1} parent=1 // pred_check
      _
    $region39: #{tpu_custom_call.1} parent=1 // pred_check_branch
      %214 = sbr.rel (0) target = $region41
    $region40: #{tpu_custom_call.1} parent=1 // pred_region
      _
    $region41: #{tpu_custom_call.1} parent=1 // pred_fallthru
      _
    %215 = vsyncpa [#allocation5], 1

</llo_original>
